<compile_context>
chip_gen: v7x
topology: tpu7x:2x2x1
jax: 0.10.0
libtpu: 0.0.40
codegen_flags: <defaults>
</compile_context>

<pallas_src>
import functools

import jax
import jax.numpy as jnp
from jax.experimental import pallas as pl
from jax.experimental.pallas import tpu as pltpu

HIDDEN_DIM = 128


def _round_up(n, m):
    return ((n + m - 1) // m) * m


def _batch_tile_cap():
    """Per-generation batch-tile cap (driven by scoped-VMEM budgets)."""
    try:
        kind = jax.devices()[0].device_kind.lower()
    except Exception:
        kind = ""
    if "v6" in kind or "v7" in kind:
        return 2048   # ~25 MiB/step with f32 x double-buffered; fits the raised 48 MiB limit
    return 1024       # v5e / unknown: ~12 MiB/step, safe near the 16 MiB scoped default


# ----------------------------- Pallas kernel ------------------------------ #
def _mlp_kernel(x_ref, w1_ref, b1_ref, w2_ref, b2_ref, o_ref):
    # In-kernel bf16 cast: x stays f32 in HBM (single HBM pass), MXU runs at bf16 rate.
    x = x_ref[...].astype(jnp.bfloat16)
    # Layer 1: (TB,1024)bf16 @ (1024,128)bf16 -> f32 accumulate on the MXU.
    h = jnp.dot(x, w1_ref[...], preferred_element_type=jnp.float32)
    h = jnp.maximum(h + b1_ref[...], 0.0)              # bias + ReLU in f32 on the VPU
    # Layer 2: (TB,128)bf16 @ (128,8)bf16 -> f32; narrow (TB,8) writeback.
    o = jnp.dot(h.astype(jnp.bfloat16), w2_ref[...],
                preferred_element_type=jnp.float32)
    o_ref[...] = (o + b2_ref[...]).astype(o_ref.dtype)


# ------------------------------- wrapper ----------------------------------- #
@functools.partial(jax.jit, static_argnames=("seq_len", "model_dim"))
def feedforward_net(x, w1, b1, w2, b2, *, seq_len=16, model_dim=64):
    """Pallas-backed forward pass of FeedForwardNet.

    x: (..., seq_len, model_dim) -- flattened to (-1, seq_len*model_dim) exactly like
    torch's x.view(-1, seq_len * model_dim).  Returns (batch, output_dim) float32.
    """
    in_dim = seq_len * model_dim
    x2d = jnp.reshape(x, (-1, in_dim))
    batch = x2d.shape[0]
    out_dim = w2.shape[1]

    # Batch tile: multiple of 16 (sublane/bf16 packing friendly), per-chip cap.
    tb = min(_batch_tile_cap(), _round_up(batch, 16))
    num_blocks = pl.cdiv(batch, tb)   # partial last block handled by Pallas masking

    w1_bf = w1.astype(jnp.bfloat16)
    w2_bf = w2.astype(jnp.bfloat16)
    b1_f32 = b1.astype(jnp.float32).reshape(1, HIDDEN_DIM)
    b2_f32 = b2.astype(jnp.float32).reshape(1, out_dim)

    return pl.pallas_call(
        _mlp_kernel,
        out_shape=jax.ShapeDtypeStruct((batch, out_dim), jnp.float32),
        grid=(num_blocks,),
        in_specs=[
            pl.BlockSpec((tb, in_dim), lambda i: (i, 0)),            # x tile (pipelined, f32)
            pl.BlockSpec((in_dim, HIDDEN_DIM), lambda i: (0, 0)),    # W1 (VMEM-resident)
            pl.BlockSpec((1, HIDDEN_DIM), lambda i: (0, 0)),         # b1 (resident)
            pl.BlockSpec((HIDDEN_DIM, out_dim), lambda i: (0, 0)),   # W2 (resident, unpadded)
            pl.BlockSpec((1, out_dim), lambda i: (0, 0)),            # b2 (resident)
        ],
        out_specs=pl.BlockSpec((tb, out_dim), lambda i: (i, 0)),
        compiler_params=pltpu.CompilerParams(
            dimension_semantics=("parallel",),   # megacore sharding on v7x; no-op on 1-TC chips
            vmem_limit_bytes=48 * 1024 * 1024,
        ),
    )(x2d, w1_bf, b1_f32, w2_bf, b2_f32)


# ---------------------- deterministic parameter init ---------------------- #
def init_params(key, in_dim=1024, hidden_dim=128, out_dim=8):
    """PyTorch nn.Linear-style init: U(-1/sqrt(fan_in), 1/sqrt(fan_in))."""
    k1, k2, k3, k4 = jax.random.split(key, 4)
    bound1 = 1.0 / (in_dim ** 0.5)
    bound2 = 1.0 / (hidden_dim ** 0.5)
    w1 = jax.random.uniform(k1, (in_dim, hidden_dim), jnp.float32, -bound1, bound1)
    b1 = jax.random.uniform(k2, (1, hidden_dim), jnp.float32, -bound1, bound1)
    w2 = jax.random.uniform(k3, (hidden_dim, out_dim), jnp.float32, -bound2, bound2)
    b2 = jax.random.uniform(k4, (1, out_dim), jnp.float32, -bound2, bound2)
    return w1, b1, w2, b2


# ---------------------------------- main ----------------------------------- #
if __name__ == "__main__":
    SEQ_LEN, MODEL_DIM, OUT_DIM = 16, 64, 8          # config: mlp_input_dimension=1024
    BATCH = 2

    key = jax.random.PRNGKey(0)
    kx, kp = jax.random.split(key)
    x = jax.random.normal(kx, (BATCH, SEQ_LEN, MODEL_DIM), jnp.float32)
    w1, b1, w2, b2 = init_params(kp, in_dim=SEQ_LEN * MODEL_DIM,
                                 hidden_dim=HIDDEN_DIM, out_dim=OUT_DIM)

    out = feedforward_net(x, w1, b1, w2, b2, seq_len=SEQ_LEN, model_dim=MODEL_DIM)
    out = jax.block_until_ready(out)

    # Pure-JAX f32 reference; tolerance loosened for in-kernel bf16 inputs (f32 accumulate).
    x2d = x.reshape(-1, SEQ_LEN * MODEL_DIM)
    ref = jnp.maximum(x2d @ w1 + b1, 0.0) @ w2 + b2
    assert out.shape == (BATCH, OUT_DIM)
    assert jnp.allclose(out, ref, atol=2e-2, rtol=2e-2), (
        float(jnp.max(jnp.abs(out - ref))))

    # Larger, non-tile-multiple batch: exercises multi-block grid + masked partial last block.
    BIG = 3000
    xb = jax.random.normal(kx, (BIG, SEQ_LEN, MODEL_DIM), jnp.float32)
    outb = jax.block_until_ready(
        feedforward_net(xb, w1, b1, w2, b2, seq_len=SEQ_LEN, model_dim=MODEL_DIM))
    refb = jnp.maximum(xb.reshape(-1, SEQ_LEN * MODEL_DIM) @ w1 + b1, 0.0) @ w2 + b2
    assert outb.shape == (BIG, OUT_DIM)
    assert jnp.allclose(outb, refb, atol=2e-2, rtol=2e-2), (
        float(jnp.max(jnp.abs(outb - refb))))

    print("KERNEL_OK")
</pallas_src>

<mosaic_0001>
module attributes {stable_mosaic.version = 11 : i64} {
  func.func @_mlp_kernel(%arg0: i32, %arg1: memref<16x1024xf32, #tpu.memory_space<vmem>>, %arg2: memref<1024x128xbf16, #tpu.memory_space<vmem>>, %arg3: memref<1x128xf32, #tpu.memory_space<vmem>>, %arg4: memref<128x8xbf16, #tpu.memory_space<vmem>>, %arg5: memref<1x8xf32, #tpu.memory_space<vmem>>, %arg6: memref<16x8xf32, #tpu.memory_space<vmem>>) attributes {dimension_semantics = [#tpu.dimension_semantics<parallel>], iteration_bounds = array<i64: 1>, scalar_prefetch = 0 : i64, scratch_operands = 0 : i64, tpu.core_type = #tpu.core_type<tc>, window_params = [{transform_indices = @transform_0, window_bounds = array<i64: 16, 1024>}, {pipeline_mode = #tpu.pipeline_mode<synchronous>, transform_indices = @transform_1, window_bounds = array<i64: 1024, 128>}, {pipeline_mode = #tpu.pipeline_mode<synchronous>, transform_indices = @transform_2, window_bounds = array<i64: 1, 128>}, {pipeline_mode = #tpu.pipeline_mode<synchronous>, transform_indices = @transform_3, window_bounds = array<i64: 128, 8>}, {pipeline_mode = #tpu.pipeline_mode<synchronous>, transform_indices = @transform_4, window_bounds = array<i64: 1, 8>}, {transform_indices = @transform_5, window_bounds = array<i64: 16, 8>}]} {
    %c0 = arith.constant 0 : index
    %c0_0 = arith.constant 0 : index
    %0 = vector.load %arg1[%c0, %c0_0] : memref<16x1024xf32, #tpu.memory_space<vmem>>, vector<16x1024xf32>
    %1 = arith.truncf %0 : vector<16x1024xf32> to vector<16x1024xbf16>
    %c0_1 = arith.constant 0 : index
    %c0_2 = arith.constant 0 : index
    %2 = vector.load %arg2[%c0_1, %c0_2] : memref<1024x128xbf16, #tpu.memory_space<vmem>>, vector<1024x128xbf16>
    %cst = arith.constant dense<0.000000e+00> : vector<16x128xf32>
    %3 = tpu.matmul %1, %2, %cst {dimension_numbers = #tpu.dot_dimension_numbers<[1], [0], [0], [1], [0, 0, 1, 1], [], []>} : vector<16x1024xbf16>, vector<1024x128xbf16>, vector<16x128xf32> -> vector<16x128xf32>
    %c0_3 = arith.constant 0 : index
    %c0_4 = arith.constant 0 : index
    %4 = vector.load %arg3[%c0_3, %c0_4] : memref<1x128xf32, #tpu.memory_space<vmem>>, vector<1x128xf32>
    %5 = vector.broadcast %4 : vector<1x128xf32> to vector<16x128xf32>
    %6 = arith.addf %3, %5 : vector<16x128xf32>
    %cst_5 = arith.constant 0.000000e+00 : f32
    %7 = vector.broadcast %cst_5 : f32 to vector<16x128xf32>
    %8 = arith.maximumf %6, %7 : vector<16x128xf32>
    %9 = arith.truncf %8 : vector<16x128xf32> to vector<16x128xbf16>
    %c0_6 = arith.constant 0 : index
    %c0_7 = arith.constant 0 : index
    %10 = vector.load %arg4[%c0_6, %c0_7] : memref<128x8xbf16, #tpu.memory_space<vmem>>, vector<128x8xbf16>
    %cst_8 = arith.constant dense<0.000000e+00> : vector<16x8xf32>
    %11 = tpu.matmul %9, %10, %cst_8 {dimension_numbers = #tpu.dot_dimension_numbers<[1], [0], [0], [1], [0, 0, 1, 1], [], []>} : vector<16x128xbf16>, vector<128x8xbf16>, vector<16x8xf32> -> vector<16x8xf32>
    %c0_9 = arith.constant 0 : index
    %c0_10 = arith.constant 0 : index
    %12 = vector.load %arg5[%c0_9, %c0_10] : memref<1x8xf32, #tpu.memory_space<vmem>>, vector<1x8xf32>
    %13 = vector.broadcast %12 : vector<1x8xf32> to vector<16x8xf32>
    %14 = arith.addf %11, %13 : vector<16x8xf32>
    %c0_11 = arith.constant 0 : index
    %c0_12 = arith.constant 0 : index
    %15 = vector.load %arg6[%c0_11, %c0_12] : memref<16x8xf32, #tpu.memory_space<vmem>>, vector<16x8xf32>
    tpu.vector_store %arg6[%c0_11, %c0_12], %14 {strides = array<i32>} : memref<16x8xf32, #tpu.memory_space<vmem>>, vector<16x8xf32>,
    return
  }
  func.func @transform_0(%arg0: i32) -> (i32, i32) {
    %c0_i32 = arith.constant 0 : i32
    %c0_i32_0 = arith.constant 0 : i32
    return %arg0, %c0_i32 : i32, i32
  }
  func.func @transform_1(%arg0: i32) -> (i32, i32) {
    %c0_i32 = arith.constant 0 : i32
    %c0_i32_0 = arith.constant 0 : i32
    %c0_i32_1 = arith.constant 0 : i32
    return %c0_i32, %c0_i32_0 : i32, i32
  }
  func.func @transform_2(%arg0: i32) -> (i32, i32) {
    %c0_i32 = arith.constant 0 : i32
    %c0_i32_0 = arith.constant 0 : i32
    %c0_i32_1 = arith.constant 0 : i32
    return %c0_i32, %c0_i32_0 : i32, i32
  }
  func.func @transform_3(%arg0: i32) -> (i32, i32) {
    %c0_i32 = arith.constant 0 : i32
    %c0_i32_0 = arith.constant 0 : i32
    %c0_i32_1 = arith.constant 0 : i32
    return %c0_i32, %c0_i32_0 : i32, i32
  }
  func.func @transform_4(%arg0: i32) -> (i32, i32) {
    %c0_i32 = arith.constant 0 : i32
    %c0_i32_0 = arith.constant 0 : i32
    %c0_i32_1 = arith.constant 0 : i32
    return %c0_i32, %c0_i32_0 : i32, i32
  }
  func.func @transform_5(%arg0: i32) -> (i32, i32) {
    %c0_i32 = arith.constant 0 : i32
    %c0_i32_0 = arith.constant 0 : i32
    return %arg0, %c0_i32 : i32, i32
  }
}

</mosaic_0001>

<llo_original>
// kernel: feedforward_net.1
$region0: #{feedforward_net.1}
  #allocation0 [shape = 'u32[]', space=smem, size = 0x4, offset = 0x4, fixed_abs, tag = 'smem constant byte address 0x4 - core index']
  #allocation1 [shape = 'u32[144,128]{1,0:T(1,128)}', space=vmem, size = 0x12000, scoped, tag = 'internal scratch']
  %s0 = inlined_call_operand.vmem [shape: f32[2,1024], index: 0, kind: input, shape index: {}]
  %s1 = inlined_call_operand.vmem [shape: bf16[1024,128], index: 1, kind: input, shape index: {}]
  %s2 = inlined_call_operand.vmem [shape: f32[1,128], index: 2, kind: input, shape index: {}]
  %s3 = inlined_call_operand.vmem [shape: bf16[128,8], index: 3, kind: input, shape index: {}]
  %s4 = inlined_call_operand.vmem [shape: f32[1,8], index: 4, kind: input, shape index: {}]
  %s5 = inlined_call_operand.hbm [shape: f32[2,8], index: 5, kind: output, shape index: {}]
  %s6 = sld [smem:[#allocation0]]
  $region30: #{feedforward_net.1} parent=0
    _
  %s8 = ssub.s32 1, %s6
  %s9 = scalar_select 0, %s8, %s6
  $region1: #{feedforward_net.1} parent=0
    #allocation2 [shape = 'u8[8192]{0}', space=vmem, size = 0x2000, scoped, tag = 'output window, operand 0, single buffered']
    #allocation3 [shape = 's32[1]{0}', space=sflag, size = 0x4, scoped, tag = 'scoped memory for feedforward_net.1']
    %10 = vsyncpa [#allocation3], 0
    // Predicated region
    $region2: #{feedforward_net.1} parent=1 // pred_check
      _
    $region3: #{feedforward_net.1} parent=1 // pred_check_branch
      %12 = sbr.rel (0) target = $region5
    $region4: #{feedforward_net.1} parent=1 // pred_region
      _
    $region5: #{feedforward_net.1} parent=1 // pred_fallthru
      _
    // Predicated region
    $region6: #{feedforward_net.1} parent=1 // pred_check
      _
    $region7: #{feedforward_net.1} parent=1 // pred_check_branch
      %14 = sbr.rel (0) target = $region9
    $region8: #{feedforward_net.1} parent=1 // pred_region
      _
    $region9: #{feedforward_net.1} parent=1 // pred_fallthru
      _
    // Predicated region
    $region10: #{feedforward_net.1} parent=1 // pred_check
      _
    $region11: #{feedforward_net.1} parent=1 // pred_check_branch
      %16 = sbr.rel (0) target = $region13
    $region12: #{feedforward_net.1} parent=1 // pred_region
      _
    $region13: #{feedforward_net.1} parent=1 // pred_fallthru
      _
    // Predicated region
    $region14: #{feedforward_net.1} parent=1 // pred_check
      _
    $region15: #{feedforward_net.1} parent=1 // pred_check_branch
      %18 = sbr.rel (0) target = $region17
    $region16: #{feedforward_net.1} parent=1 // pred_region
      _
    $region17: #{feedforward_net.1} parent=1 // pred_fallthru
      _
    // Predicated region
    $region18: #{feedforward_net.1} parent=1 // pred_check
      _
    $region19: #{feedforward_net.1} parent=1 // pred_check_branch
      %20 = sbr.rel (0) target = $region21
    $region20: #{feedforward_net.1} parent=1 // pred_region
      _
    $region21: #{feedforward_net.1} parent=1 // pred_fallthru
      _
    %v22 = vld [vmem:[%s0] sm:$0xff]
    %v23 = vld [vmem:[%s0 + $0x8] sm:$0xff]
    %v24 = vld [vmem:[%s0 + $0x10] sm:$0xff]
    %v25 = vld [vmem:[%s0 + $0x18] sm:$0xff]
    %v26 = vld [vmem:[%s0 + $0x20] sm:$0xff]
    %v27 = vld [vmem:[%s0 + $0x28] sm:$0xff]
    %v28 = vld [vmem:[%s0 + $0x30] sm:$0xff]
    %v29 = vld [vmem:[%s0 + $0x38] sm:$0xff]
    %v30 = vld [vmem:[%s0 + $0x40] sm:$0xff]
    %v31 = vld [vmem:[%s0 + $0x48] sm:$0xff]
    %v32 = vld [vmem:[%s0 + $0x50] sm:$0xff]
    %v33 = vld [vmem:[%s0 + $0x58] sm:$0xff]
    %v34 = vld [vmem:[%s0 + $0x60] sm:$0xff]
    %v35 = vld [vmem:[%s0 + $0x68] sm:$0xff]
    %v36 = vld [vmem:[%s0 + $0x70] sm:$0xff]
    %v37 = vld [vmem:[%s0 + $0x78] sm:$0xff]
    %v54 = vcombine.low %v22, %v24
    %v55 = vcombine.high %v22, %v24
    %v56 = vcombine.low %v26, %v28
    %v57 = vcombine.high %v26, %v28
    %v59 = vunpack.c.l.s4 1983009808
    %v60 = vunpack.c.0.s8 %v59
    %v61 = vlaneseq
    %v62 = vshrl.u32 %v61, 7
    %v63 = vsub.s32 %v60, %v62
    %v64 = vrot.slane %v54, %v63
    %v66 = vunpack.c.l.s4 1983009808
    %v67 = vunpack.c.0.s8 %v66
    %v68 = vlaneseq
    %v69 = vshrl.u32 %v68, 7
    %v70 = vsub.s32 %v67, %v69
    %v71 = vrot.slane %v55, %v70
    %v73 = vunpack.c.l.s4 1983009808
    %v74 = vunpack.c.0.s8 %v73
    %v75 = vlaneseq
    %v76 = vshrl.u32 %v75, 7
    %v77 = vsub.s32 %v74, %v76
    %v78 = vrot.slane %v56, %v77
    %v80 = vunpack.c.l.s4 1983009808
    %v81 = vunpack.c.0.s8 %v80
    %v82 = vlaneseq
    %v83 = vshrl.u32 %v82, 7
    %v84 = vsub.s32 %v81, %v83
    %v85 = vrot.slane %v57, %v84
    %v86 = vcombine.low %v64, %v78
    %v87 = vcombine.high %v64, %v78
    %v88 = vcombine.low %v71, %v85
    %v89 = vcombine.high %v71, %v85
    %v90 = vcombine.low %v23, %v25
    %v91 = vcombine.high %v23, %v25
    %v92 = vcombine.low %v27, %v29
    %v93 = vcombine.high %v27, %v29
    %v95 = vunpack.c.l.s4 1983009808
    %v96 = vunpack.c.0.s8 %v95
    %v97 = vlaneseq
    %v98 = vshrl.u32 %v97, 7
    %v99 = vsub.s32 %v96, %v98
    %v100 = vrot.slane %v90, %v99
    %v102 = vunpack.c.l.s4 1983009808
    %v103 = vunpack.c.0.s8 %v102
    %v104 = vlaneseq
    %v105 = vshrl.u32 %v104, 7
    %v106 = vsub.s32 %v103, %v105
    %v107 = vrot.slane %v91, %v106
    %v109 = vunpack.c.l.s4 1983009808
    %v110 = vunpack.c.0.s8 %v109
    %v111 = vlaneseq
    %v112 = vshrl.u32 %v111, 7
    %v113 = vsub.s32 %v110, %v112
    %v114 = vrot.slane %v92, %v113
    %v116 = vunpack.c.l.s4 1983009808
    %v117 = vunpack.c.0.s8 %v116
    %v118 = vlaneseq
    %v119 = vshrl.u32 %v118, 7
    %v120 = vsub.s32 %v117, %v119
    %v121 = vrot.slane %v93, %v120
    %v122 = vcombine.low %v100, %v114
    %v123 = vcombine.high %v100, %v114
    %v124 = vcombine.low %v107, %v121
    %v125 = vcombine.high %v107, %v121
    %v126 = vcombine.low %v30, %v32
    %v127 = vcombine.high %v30, %v32
    %v128 = vcombine.low %v34, %v36
    %v129 = vcombine.high %v34, %v36
    %v131 = vunpack.c.l.s4 1983009808
    %v132 = vunpack.c.0.s8 %v131
    %v133 = vlaneseq
    %v134 = vshrl.u32 %v133, 7
    %v135 = vsub.s32 %v132, %v134
    %v136 = vrot.slane %v126, %v135
    %v138 = vunpack.c.l.s4 1983009808
    %v139 = vunpack.c.0.s8 %v138
    %v140 = vlaneseq
    %v141 = vshrl.u32 %v140, 7
    %v142 = vsub.s32 %v139, %v141
    %v143 = vrot.slane %v127, %v142
    %v145 = vunpack.c.l.s4 1983009808
    %v146 = vunpack.c.0.s8 %v145
    %v147 = vlaneseq
    %v148 = vshrl.u32 %v147, 7
    %v149 = vsub.s32 %v146, %v148
    %v150 = vrot.slane %v128, %v149
    %v152 = vunpack.c.l.s4 1983009808
    %v153 = vunpack.c.0.s8 %v152
    %v154 = vlaneseq
    %v155 = vshrl.u32 %v154, 7
    %v156 = vsub.s32 %v153, %v155
    %v157 = vrot.slane %v129, %v156
    %v158 = vcombine.low %v136, %v150
    %v159 = vcombine.high %v136, %v150
    %v160 = vcombine.low %v143, %v157
    %v161 = vcombine.high %v143, %v157
    %v162 = vcombine.low %v31, %v33
    %v163 = vcombine.high %v31, %v33
    %v164 = vcombine.low %v35, %v37
    %v165 = vcombine.high %v35, %v37
    %v167 = vunpack.c.l.s4 1983009808
    %v168 = vunpack.c.0.s8 %v167
    %v169 = vlaneseq
    %v170 = vshrl.u32 %v169, 7
    %v171 = vsub.s32 %v168, %v170
    %v172 = vrot.slane %v162, %v171
    %v174 = vunpack.c.l.s4 1983009808
    %v175 = vunpack.c.0.s8 %v174
    %v176 = vlaneseq
    %v177 = vshrl.u32 %v176, 7
    %v178 = vsub.s32 %v175, %v177
    %v179 = vrot.slane %v163, %v178
    %v181 = vunpack.c.l.s4 1983009808
    %v182 = vunpack.c.0.s8 %v181
    %v183 = vlaneseq
    %v184 = vshrl.u32 %v183, 7
    %v185 = vsub.s32 %v182, %v184
    %v186 = vrot.slane %v164, %v185
    %v188 = vunpack.c.l.s4 1983009808
    %v189 = vunpack.c.0.s8 %v188
    %v190 = vlaneseq
    %v191 = vshrl.u32 %v190, 7
    %v192 = vsub.s32 %v189, %v191
    %v193 = vrot.slane %v165, %v192
    %v194 = vcombine.low %v172, %v186
    %v195 = vcombine.high %v172, %v186
    %v196 = vcombine.low %v179, %v193
    %v197 = vcombine.high %v179, %v193
    %v214 = vpack.c.bf16 %v158, %v86
    %v215 = vpack.c.bf16 %v159, %v87
    %v216 = vpack.c.bf16 %v160, %v88
    %v217 = vpack.c.bf16 %v161, %v89
    %v218 = vpack.c.bf16 %v194, %v122
    %v219 = vpack.c.bf16 %v195, %v123
    %v220 = vpack.c.bf16 %v196, %v124
    %v221 = vpack.c.bf16 %v197, %v125
    %v222 = vld [vmem:[%s1] sm:$0xf]
    %v223 = vld [vmem:[%s1 + $0x4] sm:$0xf]
    %v224 = vld [vmem:[%s1 + $0x8] sm:$0xf]
    %v225 = vld [vmem:[%s1 + $0xc] sm:$0xf]
    %v226 = vld [vmem:[%s1 + $0x10] sm:$0xf]
    %v227 = vld [vmem:[%s1 + $0x14] sm:$0xf]
    %v228 = vld [vmem:[%s1 + $0x18] sm:$0xf]
    %v229 = vld [vmem:[%s1 + $0x1c] sm:$0xf]
    %v230 = vld [vmem:[%s1 + $0x20] sm:$0xf]
    %v231 = vld [vmem:[%s1 + $0x24] sm:$0xf]
    %v232 = vld [vmem:[%s1 + $0x28] sm:$0xf]
    %v233 = vld [vmem:[%s1 + $0x2c] sm:$0xf]
    %v234 = vld [vmem:[%s1 + $0x30] sm:$0xf]
    %v235 = vld [vmem:[%s1 + $0x34] sm:$0xf]
    %v236 = vld [vmem:[%s1 + $0x38] sm:$0xf]
    %v237 = vld [vmem:[%s1 + $0x3c] sm:$0xf]
    %v238 = vld [vmem:[%s1 + $0x40] sm:$0xf]
    %v239 = vld [vmem:[%s1 + $0x44] sm:$0xf]
    %v240 = vld [vmem:[%s1 + $0x48] sm:$0xf]
    %v241 = vld [vmem:[%s1 + $0x4c] sm:$0xf]
    %v242 = vld [vmem:[%s1 + $0x50] sm:$0xf]
    %v243 = vld [vmem:[%s1 + $0x54] sm:$0xf]
    %v244 = vld [vmem:[%s1 + $0x58] sm:$0xf]
    %v245 = vld [vmem:[%s1 + $0x5c] sm:$0xf]
    %v246 = vld [vmem:[%s1 + $0x60] sm:$0xf]
    %v247 = vld [vmem:[%s1 + $0x64] sm:$0xf]
    %v248 = vld [vmem:[%s1 + $0x68] sm:$0xf]
    %v249 = vld [vmem:[%s1 + $0x6c] sm:$0xf]
    %v250 = vld [vmem:[%s1 + $0x70] sm:$0xf]
    %v251 = vld [vmem:[%s1 + $0x74] sm:$0xf]
    %v252 = vld [vmem:[%s1 + $0x78] sm:$0xf]
    %v253 = vld [vmem:[%s1 + $0x7c] sm:$0xf]
    %v254 = vld [vmem:[%s1 + $0x80] sm:$0xf]
    %v255 = vld [vmem:[%s1 + $0x84] sm:$0xf]
    %v256 = vld [vmem:[%s1 + $0x88] sm:$0xf]
    %v257 = vld [vmem:[%s1 + $0x8c] sm:$0xf]
    %v258 = vld [vmem:[%s1 + $0x90] sm:$0xf]
    %v259 = vld [vmem:[%s1 + $0x94] sm:$0xf]
    %v260 = vld [vmem:[%s1 + $0x98] sm:$0xf]
    %v261 = vld [vmem:[%s1 + $0x9c] sm:$0xf]
    %v262 = vld [vmem:[%s1 + $0xa0] sm:$0xf]
    %v263 = vld [vmem:[%s1 + $0xa4] sm:$0xf]
    %v264 = vld [vmem:[%s1 + $0xa8] sm:$0xf]
    %v265 = vld [vmem:[%s1 + $0xac] sm:$0xf]
    %v266 = vld [vmem:[%s1 + $0xb0] sm:$0xf]
    %v267 = vld [vmem:[%s1 + $0xb4] sm:$0xf]
    %v268 = vld [vmem:[%s1 + $0xb8] sm:$0xf]
    %v269 = vld [vmem:[%s1 + $0xbc] sm:$0xf]
    %v270 = vld [vmem:[%s1 + $0xc0] sm:$0xf]
    %v271 = vld [vmem:[%s1 + $0xc4] sm:$0xf]
    %v272 = vld [vmem:[%s1 + $0xc8] sm:$0xf]
    %v273 = vld [vmem:[%s1 + $0xcc] sm:$0xf]
    %v274 = vld [vmem:[%s1 + $0xd0] sm:$0xf]
    %v275 = vld [vmem:[%s1 + $0xd4] sm:$0xf]
    %v276 = vld [vmem:[%s1 + $0xd8] sm:$0xf]
    %v277 = vld [vmem:[%s1 + $0xdc] sm:$0xf]
    %v278 = vld [vmem:[%s1 + $0xe0] sm:$0xf]
    %v279 = vld [vmem:[%s1 + $0xe4] sm:$0xf]
    %v280 = vld [vmem:[%s1 + $0xe8] sm:$0xf]
    %v281 = vld [vmem:[%s1 + $0xec] sm:$0xf]
    %v282 = vld [vmem:[%s1 + $0xf0] sm:$0xf]
    %v283 = vld [vmem:[%s1 + $0xf4] sm:$0xf]
    %v284 = vld [vmem:[%s1 + $0xf8] sm:$0xf]
    %v285 = vld [vmem:[%s1 + $0xfc] sm:$0xf]
    %v286 = vld [vmem:[%s1 + $0x100] sm:$0xf]
    %v287 = vld [vmem:[%s1 + $0x104] sm:$0xf]
    %v288 = vld [vmem:[%s1 + $0x108] sm:$0xf]
    %v289 = vld [vmem:[%s1 + $0x10c] sm:$0xf]
    %v290 = vld [vmem:[%s1 + $0x110] sm:$0xf]
    %v291 = vld [vmem:[%s1 + $0x114] sm:$0xf]
    %v292 = vld [vmem:[%s1 + $0x118] sm:$0xf]
    %v293 = vld [vmem:[%s1 + $0x11c] sm:$0xf]
    %v294 = vld [vmem:[%s1 + $0x120] sm:$0xf]
    %v295 = vld [vmem:[%s1 + $0x124] sm:$0xf]
    %v296 = vld [vmem:[%s1 + $0x128] sm:$0xf]
    %v297 = vld [vmem:[%s1 + $0x12c] sm:$0xf]
    %v298 = vld [vmem:[%s1 + $0x130] sm:$0xf]
    %v299 = vld [vmem:[%s1 + $0x134] sm:$0xf]
    %v300 = vld [vmem:[%s1 + $0x138] sm:$0xf]
    %v301 = vld [vmem:[%s1 + $0x13c] sm:$0xf]
    %v302 = vld [vmem:[%s1 + $0x140] sm:$0xf]
    %v303 = vld [vmem:[%s1 + $0x144] sm:$0xf]
    %v304 = vld [vmem:[%s1 + $0x148] sm:$0xf]
    %v305 = vld [vmem:[%s1 + $0x14c] sm:$0xf]
    %v306 = vld [vmem:[%s1 + $0x150] sm:$0xf]
    %v307 = vld [vmem:[%s1 + $0x154] sm:$0xf]
    %v308 = vld [vmem:[%s1 + $0x158] sm:$0xf]
    %v309 = vld [vmem:[%s1 + $0x15c] sm:$0xf]
    %v310 = vld [vmem:[%s1 + $0x160] sm:$0xf]
    %v311 = vld [vmem:[%s1 + $0x164] sm:$0xf]
    %v312 = vld [vmem:[%s1 + $0x168] sm:$0xf]
    %v313 = vld [vmem:[%s1 + $0x16c] sm:$0xf]
    %v314 = vld [vmem:[%s1 + $0x170] sm:$0xf]
    %v315 = vld [vmem:[%s1 + $0x174] sm:$0xf]
    %v316 = vld [vmem:[%s1 + $0x178] sm:$0xf]
    %v317 = vld [vmem:[%s1 + $0x17c] sm:$0xf]
    %v318 = vld [vmem:[%s1 + $0x180] sm:$0xf]
    %v319 = vld [vmem:[%s1 + $0x184] sm:$0xf]
    %v320 = vld [vmem:[%s1 + $0x188] sm:$0xf]
    %v321 = vld [vmem:[%s1 + $0x18c] sm:$0xf]
    %v322 = vld [vmem:[%s1 + $0x190] sm:$0xf]
    %v323 = vld [vmem:[%s1 + $0x194] sm:$0xf]
    %v324 = vld [vmem:[%s1 + $0x198] sm:$0xf]
    %v325 = vld [vmem:[%s1 + $0x19c] sm:$0xf]
    %v326 = vld [vmem:[%s1 + $0x1a0] sm:$0xf]
    %v327 = vld [vmem:[%s1 + $0x1a4] sm:$0xf]
    %v328 = vld [vmem:[%s1 + $0x1a8] sm:$0xf]
    %v329 = vld [vmem:[%s1 + $0x1ac] sm:$0xf]
    %v330 = vld [vmem:[%s1 + $0x1b0] sm:$0xf]
    %v331 = vld [vmem:[%s1 + $0x1b4] sm:$0xf]
    %v332 = vld [vmem:[%s1 + $0x1b8] sm:$0xf]
    %v333 = vld [vmem:[%s1 + $0x1bc] sm:$0xf]
    %v334 = vld [vmem:[%s1 + $0x1c0] sm:$0xf]
    %v335 = vld [vmem:[%s1 + $0x1c4] sm:$0xf]
    %v336 = vld [vmem:[%s1 + $0x1c8] sm:$0xf]
    %v337 = vld [vmem:[%s1 + $0x1cc] sm:$0xf]
    %v338 = vld [vmem:[%s1 + $0x1d0] sm:$0xf]
    %v339 = vld [vmem:[%s1 + $0x1d4] sm:$0xf]
    %v340 = vld [vmem:[%s1 + $0x1d8] sm:$0xf]
    %v341 = vld [vmem:[%s1 + $0x1dc] sm:$0xf]
    %v342 = vld [vmem:[%s1 + $0x1e0] sm:$0xf]
    %v343 = vld [vmem:[%s1 + $0x1e4] sm:$0xf]
    %v344 = vld [vmem:[%s1 + $0x1e8] sm:$0xf]
    %v345 = vld [vmem:[%s1 + $0x1ec] sm:$0xf]
    %v346 = vld [vmem:[%s1 + $0x1f0] sm:$0xf]
    %v347 = vld [vmem:[%s1 + $0x1f4] sm:$0xf]
    %v348 = vld [vmem:[%s1 + $0x1f8] sm:$0xf]
    %v349 = vld [vmem:[%s1 + $0x1fc] sm:$0xf]
    %v350 = vld [vmem:[%s2] sm:$0x1]
    %v352 = vlaneseq
    %v353 = vshrl.u32 %v352, 7
    %v354 = vsub.s32 0, %v353
    %v355 = vrot.slane %v350, %v354
    %v485 = vunpack.c.l.b16 %v222
    %v486 = vunpack.c.l.b16 %v223
    %v487 = vunpack.c.l.b16 %v224
    %v488 = vunpack.c.l.b16 %v225
    %v489 = vunpack.c.l.b16 %v226
    %v490 = vunpack.c.l.b16 %v227
    %v491 = vunpack.c.l.b16 %v228
    %v492 = vunpack.c.l.b16 %v229
    %v493 = vunpack.c.l.b16 %v230
    %v494 = vunpack.c.l.b16 %v231
    %v495 = vunpack.c.l.b16 %v232
    %v496 = vunpack.c.l.b16 %v233
    %v497 = vunpack.c.l.b16 %v234
    %v498 = vunpack.c.l.b16 %v235
    %v499 = vunpack.c.l.b16 %v236
    %v500 = vunpack.c.l.b16 %v237
    %v501 = vunpack.c.l.b16 %v238
    %v502 = vunpack.c.l.b16 %v239
    %v503 = vunpack.c.l.b16 %v240
    %v504 = vunpack.c.l.b16 %v241
    %v505 = vunpack.c.l.b16 %v242
    %v506 = vunpack.c.l.b16 %v243
    %v507 = vunpack.c.l.b16 %v244
    %v508 = vunpack.c.l.b16 %v245
    %v509 = vunpack.c.l.b16 %v246
    %v510 = vunpack.c.l.b16 %v247
    %v511 = vunpack.c.l.b16 %v248
    %v512 = vunpack.c.l.b16 %v249
    %v513 = vunpack.c.l.b16 %v250
    %v514 = vunpack.c.l.b16 %v251
    %v515 = vunpack.c.l.b16 %v252
    %v516 = vunpack.c.l.b16 %v253
    %v517 = vunpack.c.l.b16 %v254
    %v518 = vunpack.c.l.b16 %v255
    %v519 = vunpack.c.l.b16 %v256
    %v520 = vunpack.c.l.b16 %v257
    %v521 = vunpack.c.l.b16 %v258
    %v522 = vunpack.c.l.b16 %v259
    %v523 = vunpack.c.l.b16 %v260
    %v524 = vunpack.c.l.b16 %v261
    %v525 = vunpack.c.l.b16 %v262
    %v526 = vunpack.c.l.b16 %v263
    %v527 = vunpack.c.l.b16 %v264
    %v528 = vunpack.c.l.b16 %v265
    %v529 = vunpack.c.l.b16 %v266
    %v530 = vunpack.c.l.b16 %v267
    %v531 = vunpack.c.l.b16 %v268
    %v532 = vunpack.c.l.b16 %v269
    %v533 = vunpack.c.l.b16 %v270
    %v534 = vunpack.c.l.b16 %v271
    %v535 = vunpack.c.l.b16 %v272
    %v536 = vunpack.c.l.b16 %v273
    %v537 = vunpack.c.l.b16 %v274
    %v538 = vunpack.c.l.b16 %v275
    %v539 = vunpack.c.l.b16 %v276
    %v540 = vunpack.c.l.b16 %v277
    %v541 = vunpack.c.l.b16 %v278
    %v542 = vunpack.c.l.b16 %v279
    %v543 = vunpack.c.l.b16 %v280
    %v544 = vunpack.c.l.b16 %v281
    %v545 = vunpack.c.l.b16 %v282
    %v546 = vunpack.c.l.b16 %v283
    %v547 = vunpack.c.l.b16 %v284
    %v548 = vunpack.c.l.b16 %v285
    %v549 = vunpack.c.l.b16 %v286
    %v550 = vunpack.c.l.b16 %v287
    %v551 = vunpack.c.l.b16 %v288
    %v552 = vunpack.c.l.b16 %v289
    %v553 = vunpack.c.l.b16 %v290
    %v554 = vunpack.c.l.b16 %v291
    %v555 = vunpack.c.l.b16 %v292
    %v556 = vunpack.c.l.b16 %v293
    %v557 = vunpack.c.l.b16 %v294
    %v558 = vunpack.c.l.b16 %v295
    %v559 = vunpack.c.l.b16 %v296
    %v560 = vunpack.c.l.b16 %v297
    %v561 = vunpack.c.l.b16 %v298
    %v562 = vunpack.c.l.b16 %v299
    %v563 = vunpack.c.l.b16 %v300
    %v564 = vunpack.c.l.b16 %v301
    %v565 = vunpack.c.l.b16 %v302
    %v566 = vunpack.c.l.b16 %v303
    %v567 = vunpack.c.l.b16 %v304
    %v568 = vunpack.c.l.b16 %v305
    %v569 = vunpack.c.l.b16 %v306
    %v570 = vunpack.c.l.b16 %v307
    %v571 = vunpack.c.l.b16 %v308
    %v572 = vunpack.c.l.b16 %v309
    %v573 = vunpack.c.l.b16 %v310
    %v574 = vunpack.c.l.b16 %v311
    %v575 = vunpack.c.l.b16 %v312
    %v576 = vunpack.c.l.b16 %v313
    %v577 = vunpack.c.l.b16 %v314
    %v578 = vunpack.c.l.b16 %v315
    %v579 = vunpack.c.l.b16 %v316
    %v580 = vunpack.c.l.b16 %v317
    %v581 = vunpack.c.l.b16 %v318
    %v582 = vunpack.c.l.b16 %v319
    %v583 = vunpack.c.l.b16 %v320
    %v584 = vunpack.c.l.b16 %v321
    %v585 = vunpack.c.l.b16 %v322
    %v586 = vunpack.c.l.b16 %v323
    %v587 = vunpack.c.l.b16 %v324
    %v588 = vunpack.c.l.b16 %v325
    %v589 = vunpack.c.l.b16 %v326
    %v590 = vunpack.c.l.b16 %v327
    %v591 = vunpack.c.l.b16 %v328
    %v592 = vunpack.c.l.b16 %v329
    %v593 = vunpack.c.l.b16 %v330
    %v594 = vunpack.c.l.b16 %v331
    %v595 = vunpack.c.l.b16 %v332
    %v596 = vunpack.c.l.b16 %v333
    %v597 = vunpack.c.l.b16 %v334
    %v598 = vunpack.c.l.b16 %v335
    %v599 = vunpack.c.l.b16 %v336
    %v600 = vunpack.c.l.b16 %v337
    %v601 = vunpack.c.l.b16 %v338
    %v602 = vunpack.c.l.b16 %v339
    %v603 = vunpack.c.l.b16 %v340
    %v604 = vunpack.c.l.b16 %v341
    %v605 = vunpack.c.l.b16 %v342
    %v606 = vunpack.c.l.b16 %v343
    %v607 = vunpack.c.l.b16 %v344
    %v608 = vunpack.c.l.b16 %v345
    %v609 = vunpack.c.l.b16 %v346
    %v610 = vunpack.c.l.b16 %v347
    %v611 = vunpack.c.l.b16 %v348
    %v612 = vunpack.c.l.b16 %v349
    %v613 = vpack.c.b16 %v486, %v485
    %v614 = vpack.c.b16 %v488, %v487
    %v615 = vpack.c.b16 %v490, %v489
    %v616 = vpack.c.b16 %v492, %v491
    %v617 = vpack.c.b16 %v494, %v493
    %v618 = vpack.c.b16 %v496, %v495
    %v619 = vpack.c.b16 %v498, %v497
    %v620 = vpack.c.b16 %v500, %v499
    %v621 = vpack.c.b16 %v502, %v501
    %v622 = vpack.c.b16 %v504, %v503
    %v623 = vpack.c.b16 %v506, %v505
    %v624 = vpack.c.b16 %v508, %v507
    %v625 = vpack.c.b16 %v510, %v509
    %v626 = vpack.c.b16 %v512, %v511
    %v627 = vpack.c.b16 %v514, %v513
    %v628 = vpack.c.b16 %v516, %v515
    %v629 = vpack.c.b16 %v518, %v517
    %v630 = vpack.c.b16 %v520, %v519
    %v631 = vpack.c.b16 %v522, %v521
    %v632 = vpack.c.b16 %v524, %v523
    %v633 = vpack.c.b16 %v526, %v525
    %v634 = vpack.c.b16 %v528, %v527
    %v635 = vpack.c.b16 %v530, %v529
    %v636 = vpack.c.b16 %v532, %v531
    %v637 = vpack.c.b16 %v534, %v533
    %v638 = vpack.c.b16 %v536, %v535
    %v639 = vpack.c.b16 %v538, %v537
    %v640 = vpack.c.b16 %v540, %v539
    %v641 = vpack.c.b16 %v542, %v541
    %v642 = vpack.c.b16 %v544, %v543
    %v643 = vpack.c.b16 %v546, %v545
    %v644 = vpack.c.b16 %v548, %v547
    %v645 = vpack.c.b16 %v550, %v549
    %v646 = vpack.c.b16 %v552, %v551
    %v647 = vpack.c.b16 %v554, %v553
    %v648 = vpack.c.b16 %v556, %v555
    %v649 = vpack.c.b16 %v558, %v557
    %v650 = vpack.c.b16 %v560, %v559
    %v651 = vpack.c.b16 %v562, %v561
    %v652 = vpack.c.b16 %v564, %v563
    %v653 = vpack.c.b16 %v566, %v565
    %v654 = vpack.c.b16 %v568, %v567
    %v655 = vpack.c.b16 %v570, %v569
    %v656 = vpack.c.b16 %v572, %v571
    %v657 = vpack.c.b16 %v574, %v573
    %v658 = vpack.c.b16 %v576, %v575
    %v659 = vpack.c.b16 %v578, %v577
    %v660 = vpack.c.b16 %v580, %v579
    %v661 = vpack.c.b16 %v582, %v581
    %v662 = vpack.c.b16 %v584, %v583
    %v663 = vpack.c.b16 %v586, %v585
    %v664 = vpack.c.b16 %v588, %v587
    %v665 = vpack.c.b16 %v590, %v589
    %v666 = vpack.c.b16 %v592, %v591
    %v667 = vpack.c.b16 %v594, %v593
    %v668 = vpack.c.b16 %v596, %v595
    %v669 = vpack.c.b16 %v598, %v597
    %v670 = vpack.c.b16 %v600, %v599
    %v671 = vpack.c.b16 %v602, %v601
    %v672 = vpack.c.b16 %v604, %v603
    %v673 = vpack.c.b16 %v606, %v605
    %v674 = vpack.c.b16 %v608, %v607
    %v675 = vpack.c.b16 %v610, %v609
    %v676 = vpack.c.b16 %v612, %v611
    %741 = vmatprep.subr.bf16.mxu0 0
    %742 = vmatpush1.bf16.msra.mxu0 %v613
    %743 = vmatprep.subr.bf16.mxu0 0
    %744 = vmatpush1.bf16.msra.mxu0 %v614
    %745 = vmatprep.subr.bf16.mxu0 0
    %746 = vmatpush1.bf16.msra.mxu0 %v615
    %747 = vmatprep.subr.bf16.mxu0 0
    %748 = vmatpush1.bf16.msra.mxu0 %v616
    %749 = vmatprep.subr.bf16.mxu0 0
    %750 = vmatpush1.bf16.msra.mxu0 %v617
    %751 = vmatprep.subr.bf16.mxu0 0
    %752 = vmatpush1.bf16.msra.mxu0 %v618
    %753 = vmatprep.subr.bf16.mxu0 0
    %754 = vmatpush1.bf16.msra.mxu0 %v619
    %755 = vmatprep.subr.bf16.mxu0 0
    %756 = vmatpush1.bf16.msra.mxu0 %v620
    %757 = vmatprep.subr.bf16.mxu0 0
    %758 = vmatpush1.bf16.msra.mxu0 %v621
    %759 = vmatprep.subr.bf16.mxu0 0
    %760 = vmatpush1.bf16.msra.mxu0 %v622
    %761 = vmatprep.subr.bf16.mxu0 0
    %762 = vmatpush1.bf16.msra.mxu0 %v623
    %763 = vmatprep.subr.bf16.mxu0 0
    %764 = vmatpush1.bf16.msra.mxu0 %v624
    %765 = vmatprep.subr.bf16.mxu0 0
    %766 = vmatpush1.bf16.msra.mxu0 %v625
    %767 = vmatprep.subr.bf16.mxu0 0
    %768 = vmatpush1.bf16.msra.mxu0 %v626
    %769 = vmatprep.subr.bf16.mxu0 0
    %770 = vmatpush1.bf16.msra.mxu0 %v627
    %771 = vmatprep.subr.bf16.mxu0 0
    %772 = vmatpush1.bf16.msra.mxu0 %v628
    %773 = vmatprep.mubr.bf16.mxu0 %v215
    %774 = vmatmul.mubr.bf16.gmra.mrb[0].mxu0 %v214
    %v775 = vpop.f32.mrb[0].mxu0
    %v776 = vadd.f32 %v355, %v775
    %v777 = vpop.f32.mrb[0].mxu0
    %v778 = vpop.f32.mrb[0].mxu0
    %v779 = vadd.f32 %v355, %v778
    %v780 = vpop.f32.mrb[0].mxu0
    %781 = vdwg.mxu0
    %782 = vmatprep.subr.bf16.mxu0 0
    %783 = vmatpush1.bf16.msra.mxu0 %v629
    %784 = vmatprep.subr.bf16.mxu0 0
    %785 = vmatpush1.bf16.msra.mxu0 %v630
    %786 = vmatprep.subr.bf16.mxu0 0
    %787 = vmatpush1.bf16.msra.mxu0 %v631
    %788 = vmatprep.subr.bf16.mxu0 0
    %789 = vmatpush1.bf16.msra.mxu0 %v632
    %790 = vmatprep.subr.bf16.mxu0 0
    %791 = vmatpush1.bf16.msra.mxu0 %v633
    %792 = vmatprep.subr.bf16.mxu0 0
    %793 = vmatpush1.bf16.msra.mxu0 %v634
    %794 = vmatprep.subr.bf16.mxu0 0
    %795 = vmatpush1.bf16.msra.mxu0 %v635
    %796 = vmatprep.subr.bf16.mxu0 0
    %797 = vmatpush1.bf16.msra.mxu0 %v636
    %798 = vmatprep.subr.bf16.mxu0 0
    %799 = vmatpush1.bf16.msra.mxu0 %v637
    %800 = vmatprep.subr.bf16.mxu0 0
    %801 = vmatpush1.bf16.msra.mxu0 %v638
    %802 = vmatprep.subr.bf16.mxu0 0
    %803 = vmatpush1.bf16.msra.mxu0 %v639
    %804 = vmatprep.subr.bf16.mxu0 0
    %805 = vmatpush1.bf16.msra.mxu0 %v640
    %806 = vmatprep.subr.bf16.mxu0 0
    %807 = vmatpush1.bf16.msra.mxu0 %v641
    %808 = vmatprep.subr.bf16.mxu0 0
    %809 = vmatpush1.bf16.msra.mxu0 %v642
    %810 = vmatprep.subr.bf16.mxu0 0
    %811 = vmatpush1.bf16.msra.mxu0 %v643
    %812 = vmatprep.subr.bf16.mxu0 0
    %813 = vmatpush1.bf16.msra.mxu0 %v644
    %814 = vmatprep.mubr.bf16.mxu0 %v217
    %815 = vmatmul.mubr.bf16.gmra.mrb[0].mxu0 %v216
    %v816 = vpop.f32.mrb[0].mxu0
    %v817 = vadd.f32 %v776, %v816
    %v818 = vpop.f32.mrb[0].mxu0
    %v819 = vpop.f32.mrb[0].mxu0
    %v820 = vadd.f32 %v779, %v819
    %v821 = vpop.f32.mrb[0].mxu0
    %822 = vdwg.mxu0
    %823 = vmatprep.subr.bf16.mxu0 0
    %824 = vmatpush1.bf16.msra.mxu0 %v645
    %825 = vmatprep.subr.bf16.mxu0 0
    %826 = vmatpush1.bf16.msra.mxu0 %v646
    %827 = vmatprep.subr.bf16.mxu0 0
    %828 = vmatpush1.bf16.msra.mxu0 %v647
    %829 = vmatprep.subr.bf16.mxu0 0
    %830 = vmatpush1.bf16.msra.mxu0 %v648
    %831 = vmatprep.subr.bf16.mxu0 0
    %832 = vmatpush1.bf16.msra.mxu0 %v649
    %833 = vmatprep.subr.bf16.mxu0 0
    %834 = vmatpush1.bf16.msra.mxu0 %v650
    %835 = vmatprep.subr.bf16.mxu0 0
    %836 = vmatpush1.bf16.msra.mxu0 %v651
    %837 = vmatprep.subr.bf16.mxu0 0
    %838 = vmatpush1.bf16.msra.mxu0 %v652
    %839 = vmatprep.subr.bf16.mxu0 0
    %840 = vmatpush1.bf16.msra.mxu0 %v653
    %841 = vmatprep.subr.bf16.mxu0 0
    %842 = vmatpush1.bf16.msra.mxu0 %v654
    %843 = vmatprep.subr.bf16.mxu0 0
    %844 = vmatpush1.bf16.msra.mxu0 %v655
    %845 = vmatprep.subr.bf16.mxu0 0
    %846 = vmatpush1.bf16.msra.mxu0 %v656
    %847 = vmatprep.subr.bf16.mxu0 0
    %848 = vmatpush1.bf16.msra.mxu0 %v657
    %849 = vmatprep.subr.bf16.mxu0 0
    %850 = vmatpush1.bf16.msra.mxu0 %v658
    %851 = vmatprep.subr.bf16.mxu0 0
    %852 = vmatpush1.bf16.msra.mxu0 %v659
    %853 = vmatprep.subr.bf16.mxu0 0
    %854 = vmatpush1.bf16.msra.mxu0 %v660
    %855 = vmatprep.mubr.bf16.mxu0 %v219
    %856 = vmatmul.mubr.bf16.gmra.mrb[0].mxu0 %v218
    %v857 = vpop.f32.mrb[0].mxu0
    %v858 = vadd.f32 %v817, %v857
    %v859 = vpop.f32.mrb[0].mxu0
    %v860 = vpop.f32.mrb[0].mxu0
    %v861 = vadd.f32 %v820, %v860
    %v862 = vpop.f32.mrb[0].mxu0
    %863 = vdwg.mxu0
    %864 = vmatprep.subr.bf16.mxu0 0
    %865 = vmatpush1.bf16.msra.mxu0 %v661
    %866 = vmatprep.subr.bf16.mxu0 0
    %867 = vmatpush1.bf16.msra.mxu0 %v662
    %868 = vmatprep.subr.bf16.mxu0 0
    %869 = vmatpush1.bf16.msra.mxu0 %v663
    %870 = vmatprep.subr.bf16.mxu0 0
    %871 = vmatpush1.bf16.msra.mxu0 %v664
    %872 = vmatprep.subr.bf16.mxu0 0
    %873 = vmatpush1.bf16.msra.mxu0 %v665
    %874 = vmatprep.subr.bf16.mxu0 0
    %875 = vmatpush1.bf16.msra.mxu0 %v666
    %876 = vmatprep.subr.bf16.mxu0 0
    %877 = vmatpush1.bf16.msra.mxu0 %v667
    %878 = vmatprep.subr.bf16.mxu0 0
    %879 = vmatpush1.bf16.msra.mxu0 %v668
    %880 = vmatprep.subr.bf16.mxu0 0
    %881 = vmatpush1.bf16.msra.mxu0 %v669
    %882 = vmatprep.subr.bf16.mxu0 0
    %883 = vmatpush1.bf16.msra.mxu0 %v670
    %884 = vmatprep.subr.bf16.mxu0 0
    %885 = vmatpush1.bf16.msra.mxu0 %v671
    %886 = vmatprep.subr.bf16.mxu0 0
    %887 = vmatpush1.bf16.msra.mxu0 %v672
    %888 = vmatprep.subr.bf16.mxu0 0
    %889 = vmatpush1.bf16.msra.mxu0 %v673
    %890 = vmatprep.subr.bf16.mxu0 0
    %891 = vmatpush1.bf16.msra.mxu0 %v674
    %892 = vmatprep.subr.bf16.mxu0 0
    %893 = vmatpush1.bf16.msra.mxu0 %v675
    %894 = vmatprep.subr.bf16.mxu0 0
    %895 = vmatpush1.bf16.msra.mxu0 %v676
    %896 = vmatprep.mubr.bf16.mxu0 %v221
    %897 = vmatmul.mubr.bf16.gmra.mrb[0].mxu0 %v220
    %v898 = vpop.f32.mrb[0].mxu0
    %v899 = vadd.f32 %v858, %v898
    %v900 = vpop.f32.mrb[0].mxu0
    %v901 = vpop.f32.mrb[0].mxu0
    %v902 = vadd.f32 %v861, %v901
    %v903 = vpop.f32.mrb[0].mxu0
    %904 = vdwg.mxu0
    %v905 = vmax.f32 %v899, 0.0
    %v906 = vmax.f32 %v902, 0.0
    %v907 = vpack.c.bf16 %v906, %v905
    %v908 = vld [vmem:[%s3] sm:$0xf]
    %v909 = vld [vmem:[%s3 + $0x4] sm:$0xf]
    %v910 = vld [vmem:[%s3 + $0x8] sm:$0xf]
    %v911 = vld [vmem:[%s3 + $0xc] sm:$0xf]
    %v912 = vld [vmem:[%s3 + $0x10] sm:$0xf]
    %v913 = vld [vmem:[%s3 + $0x14] sm:$0xf]
    %v914 = vld [vmem:[%s3 + $0x18] sm:$0xf]
    %v915 = vld [vmem:[%s3 + $0x1c] sm:$0xf]
    %v916 = vld [vmem:[%s3 + $0x20] sm:$0xf]
    %v917 = vld [vmem:[%s3 + $0x24] sm:$0xf]
    %v918 = vld [vmem:[%s3 + $0x28] sm:$0xf]
    %v919 = vld [vmem:[%s3 + $0x2c] sm:$0xf]
    %v920 = vld [vmem:[%s3 + $0x30] sm:$0xf]
    %v921 = vld [vmem:[%s3 + $0x34] sm:$0xf]
    %v922 = vld [vmem:[%s3 + $0x38] sm:$0xf]
    %v923 = vld [vmem:[%s3 + $0x3c] sm:$0xf]
    %v924 = vld [vmem:[%s4] sm:$0x1]
    %v926 = vlaneseq
    %v927 = vshrl.u32 %v926, 7
    %v928 = vsub.s32 0, %v927
    %v929 = vrot.slane %v924, %v928
    %v947 = vunpack.c.l.b16 %v908
    %v948 = vunpack.c.l.b16 %v909
    %v949 = vunpack.c.l.b16 %v910
    %v950 = vunpack.c.l.b16 %v911
    %v951 = vunpack.c.l.b16 %v912
    %v952 = vunpack.c.l.b16 %v913
    %v953 = vunpack.c.l.b16 %v914
    %v954 = vunpack.c.l.b16 %v915
    %v955 = vunpack.c.l.b16 %v916
    %v956 = vunpack.c.l.b16 %v917
    %v957 = vunpack.c.l.b16 %v918
    %v958 = vunpack.c.l.b16 %v919
    %v959 = vunpack.c.l.b16 %v920
    %v960 = vunpack.c.l.b16 %v921
    %v961 = vunpack.c.l.b16 %v922
    %v962 = vunpack.c.l.b16 %v923
    %v963 = vpack.c.b16 %v948, %v947
    %v964 = vpack.c.b16 %v950, %v949
    %v965 = vpack.c.b16 %v952, %v951
    %v966 = vpack.c.b16 %v954, %v953
    %v967 = vpack.c.b16 %v956, %v955
    %v968 = vpack.c.b16 %v958, %v957
    %v969 = vpack.c.b16 %v960, %v959
    %v970 = vpack.c.b16 %v962, %v961
    %979 = vmatprep.subr.bf16.mxu0 0
    %980 = vmatpush1.bf16.msra.mxu0 %v963
    %981 = vmatprep.subr.bf16.mxu0 0
    %982 = vmatpush1.bf16.msra.mxu0 %v964
    %983 = vmatprep.subr.bf16.mxu0 0
    %984 = vmatpush1.bf16.msra.mxu0 %v965
    %985 = vmatprep.subr.bf16.mxu0 0
    %986 = vmatpush1.bf16.msra.mxu0 %v966
    %987 = vmatprep.subr.bf16.mxu0 0
    %988 = vmatpush1.bf16.msra.mxu0 %v967
    %989 = vmatprep.subr.bf16.mxu0 0
    %990 = vmatpush1.bf16.msra.mxu0 %v968
    %991 = vmatprep.subr.bf16.mxu0 0
    %992 = vmatpush1.bf16.msra.mxu0 %v969
    %993 = vmatprep.subr.bf16.mxu0 0
    %994 = vmatpush1.bf16.msra.mxu0 %v970
    %995 = vmatprep.subr.bf16.mxu0 0
    %996 = vmatpush1.bf16.msra.mxu0 0
    %997 = vmatprep.subr.bf16.mxu0 0
    %998 = vmatpush1.bf16.msra.mxu0 0
    %999 = vmatprep.subr.bf16.mxu0 0
    %1000 = vmatpush1.bf16.msra.mxu0 0
    %1001 = vmatprep.subr.bf16.mxu0 0
    %1002 = vmatpush1.bf16.msra.mxu0 0
    %1003 = vmatprep.subr.bf16.mxu0 0
    %1004 = vmatpush1.bf16.msra.mxu0 0
    %1005 = vmatprep.subr.bf16.mxu0 0
    %1006 = vmatpush1.bf16.msra.mxu0 0
    %1007 = vmatprep.subr.bf16.mxu0 0
    %1008 = vmatpush1.bf16.msra.mxu0 0
    %1009 = vmatprep.subr.bf16.mxu0 0
    %1010 = vmatpush1.bf16.msra.mxu0 0
    %1011 = vmatprep.mubr.bf16.mxu0 0
    %1012 = vmatmul.mubr.bf16.gmra.mrb[0].mxu0 %v907
    %v1013 = vpop.f32.mrb[0].mxu0
    %v1014 = vadd.f32 %v929, %v1013
    %v1015 = vpop.f32.mrb[0].mxu0
    %v1016 = vpop.f32.mrb[0].mxu0
    %v1017 = vadd.f32 %v929, %v1016
    %v1018 = vpop.f32.mrb[0].mxu0
    %1019 = vdwg.mxu0
    %vm1020 = vcmask 64512
    %1021 = vst.msk [vmem:[#allocation2] sm:$0xff] %vm1020, %v1014
    %1022 = vst.msk [vmem:[#allocation2 + $0x8] sm:$0xff] %vm1020, %v1017
    // Predicated region
    $region22: #{feedforward_net.1} parent=1 // pred_check
      _
    $region23: #{feedforward_net.1} parent=1 // pred_check_branch
      %1024 = sbr.rel (0) target = $region25
    $region24: #{feedforward_net.1} parent=1 // pred_region
      %s1026 = ssub.s32 256, 32
      %1027 = vsyncadd [#allocation3], %s1026
      %s1028 = sshll.u32 [#allocation2], 4
      %s1029 = int_to_ptr.vmem [resolvable:$true] %s1028
      %1034 = dma.vmem_to_hbm [thread:$0]  %s1029, 32, %s5, [#allocation3], 32, 32, 2
    $region25: #{feedforward_net.1} parent=1 // pred_fallthru
      _
    // Predicated region
    $region26: #{feedforward_net.1} parent=1 // pred_check
      _
    $region27: #{feedforward_net.1} parent=1 // pred_check_branch
      %1036 = sbr.rel (0) target = $region29
    $region28: #{feedforward_net.1} parent=1 // pred_region
      %1037 = dma.done [#allocation3], 256
    $region29: #{feedforward_net.1} parent=1 // pred_fallthru
      _
    %1038 = vsyncpa [#allocation3], 1

</llo_original>
